<compile_context>
chip_gen: v6e
topology: v6e:2x2x1
jax: 0.10.0
libtpu: 0.0.40
codegen_flags: <defaults>
</compile_context>

<pallas_src>
import functools

import jax
import jax.numpy as jnp
from jax.experimental import pallas as pl
from jax.experimental.pallas import tpu as pltpu


# --------------------------- budgets (per chip gen) --------------------------


def _tpu_budgets():
    """Returns (vmem_limit_bytes, streaming_slab_bytes), generation aware."""
    vmem_cap = 64 * 1024 * 1024          # conservative fallback (v7x physical)
    try:
        info = pltpu.get_tpu_info()
        cap = getattr(info, "vmem_capacity_bytes", None)
        if cap:
            vmem_cap = int(cap)
    except Exception:
        pass
    # Leave ~25% headroom for compiler scratch: ~96 MiB on v5e/v6e (128 MiB
    # physical), ~48 MiB on v7x (64 MiB physical).
    vmem_limit = min((vmem_cap * 3) // 4, 100 * 1024 * 1024)
    # Per-grid-step streaming slab target (double-buffered in + out ~= 4x).
    stream_slab = 8 * 1024 * 1024 if vmem_cap >= (100 << 20) else 4 * 1024 * 1024
    return vmem_limit, stream_slab


def _choose_hw_tile(HW, C, itemsize, target_slab_bytes):
    """Largest lane-dense (multiple-of-128) HW tile within the slab budget."""
    max_lanes = max(128, target_slab_bytes // max(1, C * itemsize))
    if HW <= max_lanes:
        return HW                      # full extent: exempt from the 128 rule
    return (max_lanes // 128) * 128    # lane-dense -> unmasked vst


def _choose_sum_tile(HW, C, itemsize, target_slab_bytes):
    """Phase-1 tile: multiple of 128 (for the lane-group fold), bounded unroll."""
    lanes = target_slab_bytes // max(1, C * itemsize)
    lanes = min(lanes, 64 * 128)                 # bound the per-tile fold depth
    lanes = max(128, (lanes // 128) * 128)
    if HW >= 128:
        lanes = min(lanes, (HW // 128) * 128)    # never wider than the array
    return lanes


# --------------------------- fused batch-tiled path --------------------------


def _se_fused_kernel(x_ref, w1t_ref, w2t_ref, o_ref):
    """x_ref: (Bt, C, HW); w1t: (C, Cr); w2t: (Cr, C); o_ref: (Bt, C, HW)."""
    x = x_ref[...]                                           # native dtype
    # Squeeze: AdaptiveAvgPool2d(1) == mean over spatial (f32 accumulation).
    s = jnp.mean(x.astype(jnp.float32), axis=-1)             # (Bt, C)
    # Excitation MLP (tiny; mem-bound kernel, MXU utilization irrelevant).
    h = jnp.maximum(
        jnp.dot(s, w1t_ref[...].astype(jnp.float32),
                preferred_element_type=jnp.float32), 0.0)    # (Bt, Cr)
    y = jax.nn.sigmoid(
        jnp.dot(h, w2t_ref[...].astype(jnp.float32),
                preferred_element_type=jnp.float32))         # (Bt, C)
    # Scale: keep the streamed multiply in the input dtype (bf16 stays bf16).
    o_ref[...] = (x * y.astype(x.dtype)[:, :, None]).astype(o_ref.dtype)


def _se_fused(x_flat, w1t, w2t, batch_tile, vmem_limit):
    B, C, HW = x_flat.shape
    Cr = w1t.shape[1]
    itemsize = x_flat.dtype.itemsize
    nb = pl.cdiv(B, batch_tile)
    cost = pl.CostEstimate(
        flops=2 * B * C * HW + 4 * B * C * Cr,
        transcendentals=B * C,
        bytes_accessed=2 * B * C * HW * itemsize + 2 * C * Cr * 4,
    )
    return pl.pallas_call(
        _se_fused_kernel,
        out_shape=jax.ShapeDtypeStruct((B, C, HW), x_flat.dtype),
        grid=(nb,),
        in_specs=[
            pl.BlockSpec((batch_tile, C, HW), lambda b: (b, 0, 0)),
            pl.BlockSpec((C, Cr), lambda b: (0, 0)),
            pl.BlockSpec((Cr, C), lambda b: (0, 0)),
        ],
        out_specs=pl.BlockSpec((batch_tile, C, HW), lambda b: (b, 0, 0)),
        compiler_params=pltpu.CompilerParams(
            dimension_semantics=("parallel",),
            vmem_limit_bytes=vmem_limit,
        ),
        cost_estimate=cost,
    )(x_flat, w1t, w2t)


# ------------------------ two-phase: partial sums -----------------------------


def _se_partial_sum_kernel(x_ref, o_ref, *, hw_total, hw_tile):
    """Phase 1: lane-dense partial sums.

    x_ref: (1, C, hw_tile) native dtype; o_ref: (1, C, 128) f32 accumulator
    (output block is resident across the reduction axis).
    """
    t = pl.program_id(1)
    n_groups = hw_tile // 128
    maybe_ragged = (hw_total % hw_tile) != 0     # static

    @pl.when(t == 0)
    def _init():
        o_ref[...] = jnp.zeros_like(o_ref)

    def tile_fold(masked):
        acc = None
        for g in range(n_groups):
            xg = x_ref[:, :, g * 128:(g + 1) * 128].astype(jnp.float32)
            if masked:
                col = (t * hw_tile + g * 128 +
                       jax.lax.broadcasted_iota(jnp.int32, xg.shape, 2))
                xg = jnp.where(col < hw_total, xg, 0.0)
            acc = xg if acc is None else acc + xg
        return acc

    if maybe_ragged:
        # Only the tail tile pays for the iota/compare/select; full tiles are
        # a pure vadd fold (no per-tile cross-lane XLU reduce anywhere).
        is_last = t == pl.num_programs(1) - 1

        @pl.when(is_last)
        def _tail():
            o_ref[...] += tile_fold(True)

        @pl.when(jnp.logical_not(is_last))
        def _full():
            o_ref[...] += tile_fold(False)
    else:
        o_ref[...] += tile_fold(False)


def _se_partial_sum(x_flat, sum_tile, vmem_limit):
    B, C, HW = x_flat.shape
    itemsize = x_flat.dtype.itemsize
    n_t = pl.cdiv(HW, sum_tile)
    kernel = functools.partial(_se_partial_sum_kernel,
                               hw_total=HW, hw_tile=sum_tile)
    cost = pl.CostEstimate(
        flops=B * C * HW,
        transcendentals=0,
        bytes_accessed=B * C * HW * itemsize + B * C * 128 * 4,
    )
    return pl.pallas_call(
        kernel,
        out_shape=jax.ShapeDtypeStruct((B, C, 128), jnp.float32),
        grid=(B, n_t),
        in_specs=[pl.BlockSpec((1, C, sum_tile), lambda b, t: (b, 0, t))],
        out_specs=pl.BlockSpec((1, C, 128), lambda b, t: (b, 0, 0)),
        compiler_params=pltpu.CompilerParams(
            dimension_semantics=("parallel", "arbitrary"),
            vmem_limit_bytes=vmem_limit,
        ),
        cost_estimate=cost,
    )(x_flat)


# ------------------------ two-phase: streaming scale --------------------------


def _se_scale_kernel(x_ref, y_ref, o_ref):
    """Phase 2: pure streaming scale. x_ref: (1, C, T); y_ref: (1, C, 1) f32."""
    x = x_ref[...]
    o_ref[...] = (x * y_ref[...].astype(x.dtype)).astype(o_ref.dtype)


def _se_scale(x_flat, gate, hw_tile, vmem_limit):
    B, C, HW = x_flat.shape
    itemsize = x_flat.dtype.itemsize
    n_t = pl.cdiv(HW, hw_tile)
    cost = pl.CostEstimate(
        flops=B * C * HW,
        transcendentals=0,
        bytes_accessed=2 * B * C * HW * itemsize + B * C * 4,
    )
    return pl.pallas_call(
        _se_scale_kernel,
        out_shape=jax.ShapeDtypeStruct((B, C, HW), x_flat.dtype),
        grid=(B, n_t),
        in_specs=[
            pl.BlockSpec((1, C, hw_tile), lambda b, t: (b, 0, t)),
            pl.BlockSpec((1, C, 1), lambda b, t: (b, 0, 0)),
        ],
        out_specs=pl.BlockSpec((1, C, hw_tile), lambda b, t: (b, 0, t)),
        compiler_params=pltpu.CompilerParams(
            dimension_semantics=("parallel", "parallel"),
            vmem_limit_bytes=vmem_limit,
        ),
        cost_estimate=cost,
    )(x_flat, gate)


# ------------------------------- public API ----------------------------------


def squeeze_and_excitation(x, w1, w2, *,
                           max_fused_slab_bytes=None,
                           hw_tile=None,
                           batch_tile=None):
    """SqueezeAndExcitation forward.

    x : (B, C, H, W); w1 : (C//r, C); w2 : (C, C//r)  (PyTorch Linear layout).
    """
    B, C, H, W = x.shape
    HW = H * W
    x_flat = x.reshape(B, C, HW)
    itemsize = x_flat.dtype.itemsize
    vmem_limit, stream_slab = _tpu_budgets()

    if max_fused_slab_bytes is None:
        # Fused footprint ~= 2x(in) + 2x(out) double-buffered slabs + weights;
        # narrow dtypes also pay an f32 upcast inside the mean -> divide by 6.
        max_fused_slab_bytes = vmem_limit // (5 if itemsize >= 4 else 6)

    w1t = jnp.transpose(w1).astype(jnp.float32)   # (C, Cr)
    w2t = jnp.transpose(w2).astype(jnp.float32)   # (Cr, C)
    per_batch_bytes = C * HW * itemsize

    if per_batch_bytes <= max_fused_slab_bytes:
        # Whole (C, HW) slab(s) fit comfortably in VMEM: one fused kernel,
        # a single read + write of x.  Batch-tile small slabs up to ~4-8 MiB.
        if batch_tile is None:
            batch_tile = int(max(1, min(B, stream_slab // max(1, per_batch_bytes))))
        out_flat = _se_fused(x_flat, w1t, w2t, batch_tile, vmem_limit)
    else:
        # Two-phase: lane-dense partial-sum streaming kernel -> tiny MLP in
        # plain JAX -> streaming scale kernel.
        if hw_tile is None:
            hw_tile = _choose_hw_tile(HW, C, itemsize, stream_slab)
        sum_tile = _choose_sum_tile(HW, C, itemsize, stream_slab)
        partial = _se_partial_sum(x_flat, sum_tile, vmem_limit)   # (B, C, 128)
        s = partial.sum(axis=-1) * (1.0 / HW)                     # (B, C) f32
        h = jnp.maximum(s @ w1t, 0.0)                             # (B, Cr)
        y = jax.nn.sigmoid(h @ w2t)                               # (B, C)
        out_flat = _se_scale(x_flat, y[:, :, None], hw_tile, vmem_limit)

    return out_flat.reshape(B, C, H, W)


def _reference(x, w1, w2):
    """Pure-JAX reference matching the PyTorch module semantics."""
    s = jnp.mean(x, axis=(2, 3))                 # AdaptiveAvgPool2d(1).view(B, C)
    h = jnp.maximum(s @ w1.T, 0.0)               # Linear(c, c//r, bias=False) + ReLU
    y = jax.nn.sigmoid(h @ w2.T)                 # Linear(c//r, c, bias=False) + Sigmoid
    return x * y[:, :, None, None]               # SEMask(x) * x


if __name__ == "__main__":
    key = jax.random.PRNGKey(0)

    # Test 1: fused batch-tiled path. B=2, C=32, 16x16, r=16 -> Cr=2.
    B, C, H, W, r = 2, 32, 16, 16, 16
    Cr = C // r
    kx, k1, k2, k3, k4 = jax.random.split(key, 5)
    x = jax.random.normal(kx, (B, C, H, W), dtype=jnp.float32)
    w1 = jax.random.normal(k1, (Cr, C), dtype=jnp.float32) * 0.1   # (C//r, C)
    w2 = jax.random.normal(k2, (C, Cr), dtype=jnp.float32) * 0.1   # (C, C//r)

    ref = _reference(x, w1, w2)
    out = jax.block_until_ready(squeeze_and_excitation(x, w1, w2))
    assert out.shape == (B, C, H, W)
    assert jnp.allclose(out, ref, atol=1e-5, rtol=1e-5), "fused path mismatch"

    # Test 2: force the two-phase streaming path (multi-tile HW reduction).
    out2 = jax.block_until_ready(
        squeeze_and_excitation(x, w1, w2, max_fused_slab_bytes=0, hw_tile=128))
    assert jnp.allclose(out2, ref, atol=1e-5, rtol=1e-5), "two-phase mismatch"

    # Test 3: ragged HW (144 not a multiple of 128) on the streaming path —
    # exercises the pl.when-gated masked tail in the partial-sum kernel.
    H3 = W3 = 12
    x3 = jax.random.normal(kx, (B, C, H3, W3), dtype=jnp.float32)
    ref3 = _reference(x3, w1, w2)
    out3 = jax.block_until_ready(
        squeeze_and_excitation(x3, w1, w2, max_fused_slab_bytes=0, hw_tile=128))
    assert jnp.allclose(out3, ref3, atol=1e-5, rtol=1e-5), "ragged HW mismatch"

    # Test 4: batch-tiled fused path with a ragged batch tail (B=5, Bt=2).
    B4, C4, H4, r4 = 5, 16, 8, 4
    Cr4 = C4 // r4
    x4 = jax.random.normal(k3, (B4, C4, H4, H4), dtype=jnp.float32)
    w1b = jax.random.normal(k4, (Cr4, C4), dtype=jnp.float32) * 0.1
    w2b = jax.random.normal(k1, (C4, Cr4), dtype=jnp.float32) * 0.1
    ref4 = _reference(x4, w1b, w2b)
    out4 = jax.block_until_ready(
        squeeze_and_excitation(x4, w1b, w2b, batch_tile=2))
    assert jnp.allclose(out4, ref4, atol=1e-5, rtol=1e-5), "batch-tile mismatch"

    print("KERNEL_OK")
</pallas_src>

<mosaic_0001>
module attributes {stable_mosaic.version = 11 : i64} {
  func.func @_se_fused_kernel(%arg0: i32, %arg1: memref<2x32x256xf32, #tpu.memory_space<vmem>>, %arg2: memref<32x2xf32, #tpu.memory_space<vmem>>, %arg3: memref<2x32xf32, #tpu.memory_space<vmem>>, %arg4: memref<2x32x256xf32, #tpu.memory_space<vmem>>) attributes {dimension_semantics = [#tpu.dimension_semantics<parallel>], iteration_bounds = array<i64: 1>, scalar_prefetch = 0 : i64, scratch_operands = 0 : i64, tpu.core_type = #tpu.core_type<tc>, window_params = [{transform_indices = @transform_0, window_bounds = array<i64: 2, 32, 256>}, {pipeline_mode = #tpu.pipeline_mode<synchronous>, transform_indices = @transform_1, window_bounds = array<i64: 32, 2>}, {pipeline_mode = #tpu.pipeline_mode<synchronous>, transform_indices = @transform_2, window_bounds = array<i64: 2, 32>}, {transform_indices = @transform_3, window_bounds = array<i64: 2, 32, 256>}]} {
    %c0 = arith.constant 0 : index
    %c0_0 = arith.constant 0 : index
    %c0_1 = arith.constant 0 : index
    %0 = vector.load %arg1[%c0, %c0_0, %c0_1] : memref<2x32x256xf32, #tpu.memory_space<vmem>>, vector<2x32x256xf32>
    %cst = arith.constant dense<0.000000e+00> : vector<2x32xf32>
    %1 = vector.multi_reduction <add>, %0, %cst [2] : vector<2x32x256xf32> to vector<2x32xf32>
    %cst_2 = arith.constant 2.560000e+02 : f32
    %2 = vector.broadcast %cst_2 : f32 to vector<2x32xf32>
    %3 = arith.divf %1, %2 : vector<2x32xf32>
    %c0_3 = arith.constant 0 : index
    %c0_4 = arith.constant 0 : index
    %4 = vector.load %arg2[%c0_3, %c0_4] : memref<32x2xf32, #tpu.memory_space<vmem>>, vector<32x2xf32>
    %cst_5 = arith.constant dense<0.000000e+00> : vector<2x2xf32>
    %5 = tpu.matmul %3, %4, %cst_5 {dimension_numbers = #tpu.dot_dimension_numbers<[1], [0], [0], [1], [0, 0, 1, 1], [], []>} : vector<2x32xf32>, vector<32x2xf32>, vector<2x2xf32> -> vector<2x2xf32>
    %cst_6 = arith.constant 0.000000e+00 : f32
    %6 = vector.broadcast %cst_6 : f32 to vector<2x2xf32>
    %7 = arith.maximumf %5, %6 : vector<2x2xf32>
    %c0_7 = arith.constant 0 : index
    %c0_8 = arith.constant 0 : index
    %8 = vector.load %arg3[%c0_7, %c0_8] : memref<2x32xf32, #tpu.memory_space<vmem>>, vector<2x32xf32>
    %cst_9 = arith.constant dense<0.000000e+00> : vector<2x32xf32>
    %9 = tpu.matmul %7, %8, %cst_9 {dimension_numbers = #tpu.dot_dimension_numbers<[1], [0], [0], [1], [0, 0, 1, 1], [], []>} : vector<2x2xf32>, vector<2x32xf32>, vector<2x32xf32> -> vector<2x32xf32>
    %10 = arith.negf %9 : vector<2x32xf32>
    %11 = math.exp %10 : vector<2x32xf32>
    %cst_10 = arith.constant 1.000000e+00 : f32
    %12 = vector.broadcast %cst_10 : f32 to vector<2x32xf32>
    %13 = arith.addf %12, %11 : vector<2x32xf32>
    %14 = arith.divf %12, %13 : vector<2x32xf32>
    %15 = vector.shape_cast %14 : vector<2x32xf32> to vector<2x32x1xf32>
    %16 = vector.broadcast %15 : vector<2x32x1xf32> to vector<2x32x256xf32>
    %17 = arith.mulf %0, %16 : vector<2x32x256xf32>
    %c0_11 = arith.constant 0 : index
    %c0_12 = arith.constant 0 : index
    %c0_13 = arith.constant 0 : index
    %18 = vector.load %arg4[%c0_11, %c0_12, %c0_13] : memref<2x32x256xf32, #tpu.memory_space<vmem>>, vector<2x32x256xf32>
    tpu.vector_store %arg4[%c0_11, %c0_12, %c0_13], %17 {strides = array<i32>} : memref<2x32x256xf32, #tpu.memory_space<vmem>>, vector<2x32x256xf32>,
    return
  }
  func.func @transform_0(%arg0: i32) -> (i32, i32, i32) {
    %c0_i32 = arith.constant 0 : i32
    %c0_i32_0 = arith.constant 0 : i32
    %c0_i32_1 = arith.constant 0 : i32
    return %arg0, %c0_i32, %c0_i32_0 : i32, i32, i32
  }
  func.func @transform_1(%arg0: i32) -> (i32, i32) {
    %c0_i32 = arith.constant 0 : i32
    %c0_i32_0 = arith.constant 0 : i32
    %c0_i32_1 = arith.constant 0 : i32
    return %c0_i32, %c0_i32_0 : i32, i32
  }
  func.func @transform_2(%arg0: i32) -> (i32, i32) {
    %c0_i32 = arith.constant 0 : i32
    %c0_i32_0 = arith.constant 0 : i32
    %c0_i32_1 = arith.constant 0 : i32
    return %c0_i32, %c0_i32_0 : i32, i32
  }
  func.func @transform_3(%arg0: i32) -> (i32, i32, i32) {
    %c0_i32 = arith.constant 0 : i32
    %c0_i32_0 = arith.constant 0 : i32
    %c0_i32_1 = arith.constant 0 : i32
    return %arg0, %c0_i32, %c0_i32_0 : i32, i32, i32
  }
}

</mosaic_0001>

<llo_original>
// kernel: tpu_custom_call.1
$region0: #{tpu_custom_call.1}
  #allocation0 [shape = 'u32[]', space=smem, size = 0x4, offset = 0x4, fixed_abs, tag = 'smem constant byte address 0x4 - core index']
  #allocation1 [shape = 'u32[144,128]{1,0:T(1,128)}', space=vmem, size = 0x12000, scoped, tag = 'internal scratch']
  %s0 = inlined_call_operand.hbm [shape: f32[2,32,256], index: 0, kind: input, shape index: {}]
  %s1 = inlined_call_operand.vmem [shape: f32[32,2], index: 1, kind: input, shape index: {}]
  %s2 = inlined_call_operand.vmem [shape: f32[2,32], index: 2, kind: input, shape index: {}]
  %s3 = inlined_call_operand.hbm [shape: f32[2,32,256], index: 3, kind: output, shape index: {}]
  %s4 = sld [smem:[#allocation0]]
  $region26: #{tpu_custom_call.1} parent=0
    _
  %s6 = ssub.s32 1, %s4
  %s7 = scalar_select 0, %s6, %s4
  $region1: #{tpu_custom_call.1} parent=0
    #allocation2 [shape = 'u8[65536]{0}', space=vmem, size = 0x10000, scoped, tag = 'input window, operand 0, single buffered']
    #allocation3 [shape = 's32[1]{0}', space=sflag, size = 0x4, scoped, tag = 'scoped memory for tpu_custom_call.1']
    #allocation4 [shape = 's32[1]{0}', space=sflag, size = 0x4, scoped, tag = 'scoped memory for tpu_custom_call.1']
    #allocation5 [shape = 'u8[65536]{0}', space=vmem, size = 0x10000, scoped, tag = 'output window, operand 0, single buffered']
    %8 = vsyncpa [#allocation3], 0
    %9 = vsyncpa [#allocation4], 0
    // Predicated region
    $region2: #{tpu_custom_call.1} parent=1 // pred_check
      _
    $region3: #{tpu_custom_call.1} parent=1 // pred_check_branch
      %11 = sbr.rel (0) target = $region5
    $region4: #{tpu_custom_call.1} parent=1 // pred_region
      %s13 = ssub.s32 2048, 2048
      %14 = vsyncadd [#allocation3], %s13
      %s15 = sshll.u32 [#allocation2], 4
      %s16 = int_to_ptr.vmem [resolvable:$true] %s15
      %21 = dma.hbm_to_vmem [thread:$0]  %s0, 2048, %s16, [#allocation3], 256, 256, 16
    $region5: #{tpu_custom_call.1} parent=1 // pred_fallthru
      _
    // Predicated region
    $region6: #{tpu_custom_call.1} parent=1 // pred_check
      _
    $region7: #{tpu_custom_call.1} parent=1 // pred_check_branch
      %23 = sbr.rel (0) target = $region9
    $region8: #{tpu_custom_call.1} parent=1 // pred_region
      _
    $region9: #{tpu_custom_call.1} parent=1 // pred_fallthru
      _
    // Predicated region
    $region10: #{tpu_custom_call.1} parent=1 // pred_check
      _
    $region11: #{tpu_custom_call.1} parent=1 // pred_check_branch
      %25 = sbr.rel (0) target = $region13
    $region12: #{tpu_custom_call.1} parent=1 // pred_region
      _
    $region13: #{tpu_custom_call.1} parent=1 // pred_fallthru
      _
    // Predicated region
    $region14: #{tpu_custom_call.1} parent=1 // pred_check
      _
    $region15: #{tpu_custom_call.1} parent=1 // pred_check_branch
      %27 = sbr.rel (0) target = $region17
    $region16: #{tpu_custom_call.1} parent=1 // pred_region
      %28 = dma.done [#allocation3], 2048
    $region17: #{tpu_custom_call.1} parent=1 // pred_fallthru
      _
    %v29 = vld [vmem:[#allocation2] sm:$0xff]
    %v30 = vld [vmem:[#allocation2 + $0x8] sm:$0xff]
    %v31 = vld [vmem:[#allocation2 + $0x10] sm:$0xff]
    %v32 = vld [vmem:[#allocation2 + $0x18] sm:$0xff]
    %v33 = vld [vmem:[#allocation2 + $0x20] sm:$0xff]
    %v34 = vld [vmem:[#allocation2 + $0x28] sm:$0xff]
    %v35 = vld [vmem:[#allocation2 + $0x30] sm:$0xff]
    %v36 = vld [vmem:[#allocation2 + $0x38] sm:$0xff]
    %v37 = vld [vmem:[#allocation2 + $0x40] sm:$0xff]
    %v38 = vld [vmem:[#allocation2 + $0x48] sm:$0xff]
    %v39 = vld [vmem:[#allocation2 + $0x50] sm:$0xff]
    %v40 = vld [vmem:[#allocation2 + $0x58] sm:$0xff]
    %v41 = vld [vmem:[#allocation2 + $0x60] sm:$0xff]
    %v42 = vld [vmem:[#allocation2 + $0x68] sm:$0xff]
    %v43 = vld [vmem:[#allocation2 + $0x70] sm:$0xff]
    %v44 = vld [vmem:[#allocation2 + $0x78] sm:$0xff]
    %v45 = vadd.f32 %v29, %v30
    %46 = vadd.xlane.f32.xlu0 %v45
    %v47 = vpop.xlane.xlu0 %46
    %v48 = vadd.f32 %v31, %v32
    %49 = vadd.xlane.f32.xlu0 %v48
    %v50 = vpop.xlane.xlu0 %49
    %v51 = vadd.f32 %v33, %v34
    %52 = vadd.xlane.f32.xlu0 %v51
    %v53 = vpop.xlane.xlu0 %52
    %v54 = vadd.f32 %v35, %v36
    %55 = vadd.xlane.f32.xlu0 %v54
    %v56 = vpop.xlane.xlu0 %55
    %v57 = vadd.f32 %v37, %v38
    %58 = vadd.xlane.f32.xlu0 %v57
    %v59 = vpop.xlane.xlu0 %58
    %v60 = vadd.f32 %v39, %v40
    %61 = vadd.xlane.f32.xlu0 %v60
    %v62 = vpop.xlane.xlu0 %61
    %v63 = vadd.f32 %v41, %v42
    %64 = vadd.xlane.f32.xlu0 %v63
    %v65 = vpop.xlane.xlu0 %64
    %v66 = vadd.f32 %v43, %v44
    %67 = vadd.xlane.f32.xlu0 %v66
    %v68 = vpop.xlane.xlu0 %67
    %v69 = vrcp.pop 256.0
    %v70 = vmul.f32 %v47, %v69
    %v71 = vmul.f32 %v50, %v69
    %v72 = vmul.f32 %v53, %v69
    %v73 = vmul.f32 %v56, %v69
    %v74 = vmul.f32 %v59, %v69
    %v75 = vmul.f32 %v62, %v69
    %v76 = vmul.f32 %v65, %v69
    %v77 = vmul.f32 %v68, %v69
    %v78 = vld [vmem:[%s1] sm:$0xff]
    %v79 = vld [vmem:[%s1 + $0x8] sm:$0xff]
    %v80 = vld [vmem:[%s1 + $0x10] sm:$0xff]
    %v81 = vld [vmem:[%s1 + $0x18] sm:$0xff]
    %v90 = vlaneseq
    %v91 = vand.u32 %v90, 127
    %v92 = vlaneseq
    %v93 = vshrl.u32 %v92, 7
    %v94 = vsub.s32 %v91, %v93
    %v95 = vrot.slane %v70, %v94
    %v96 = vadd.s32 %v91, 4294967288
    %v97 = vlaneseq
    %v98 = vshrl.u32 %v97, 7
    %v99 = vsub.s32 %v96, %v98
    %v100 = vrot.slane %v71, %v99
    %vm101 = vcmask 130112
    %v102 = vsel %vm101, %v100, %v95
    %v103 = vadd.s32 %v91, 4294967280
    %v104 = vlaneseq
    %v105 = vshrl.u32 %v104, 7
    %v106 = vsub.s32 %v103, %v105
    %v107 = vrot.slane %v72, %v106
    %vm108 = vcmask 195712
    %v109 = vsel %vm108, %v107, %v102
    %v110 = vadd.s32 %v91, 4294967272
    %v111 = vlaneseq
    %v112 = vshrl.u32 %v111, 7
    %v113 = vsub.s32 %v110, %v112
    %v114 = vrot.slane %v73, %v113
    %vm115 = vcmask 261312
    %v116 = vsel %vm115, %v114, %v109
    %v117 = vlaneseq
    %v118 = vshrl.u32 %v117, 7
    %v119 = vsub.s32 %v91, %v118
    %v120 = vrot.slane %v74, %v119
    %v121 = vlaneseq
    %v122 = vshrl.u32 %v121, 7
    %v123 = vsub.s32 %v96, %v122
    %v124 = vrot.slane %v75, %v123
    %v125 = vsel %vm101, %v124, %v120
    %v126 = vlaneseq
    %v127 = vshrl.u32 %v126, 7
    %v128 = vsub.s32 %v103, %v127
    %v129 = vrot.slane %v76, %v128
    %v130 = vsel %vm108, %v129, %v125
    %v131 = vlaneseq
    %v132 = vshrl.u32 %v131, 7
    %v133 = vsub.s32 %v110, %v132
    %v134 = vrot.slane %v77, %v133
    %v135 = vsel %vm115, %v134, %v130
    %vm136 = vcmask 1041409
    %v137 = vsel %vm136, %v135, %v116
    %vm138 = vcmask 261120
    %v139 = vsel %vm138, %v137, 0
    %141 = vmatprep.subr.mxu0 0.0
    %142 = vmatpush1.msra.mxu0 0.0
    %143 = vmatprep.subr.mxu0 0.0
    %144 = vmatpush1.msra.mxu0 0.0
    %145 = vmatprep.subr.mxu0 0.0
    %146 = vmatpush1.msra.mxu0 0.0
    %147 = vmatprep.subr.mxu0 0.0
    %148 = vmatpush1.msra.mxu0 0.0
    %149 = vmatprep.subr.mxu0 0.0
    %150 = vmatpush1.msra.mxu0 0.0
    %151 = vmatprep.subr.mxu0 0.0
    %152 = vmatpush1.msra.mxu0 0.0
    %153 = vmatprep.subr.mxu0 0.0
    %154 = vmatpush1.msra.mxu0 0.0
    %155 = vmatprep.subr.mxu0 0.0
    %156 = vmatpush1.msra.mxu0 0.0
    %157 = vmatprep.subr.mxu0 0.0
    %158 = vmatpush1.msra.mxu0 0.0
    %159 = vmatprep.subr.mxu0 0.0
    %160 = vmatpush1.msra.mxu0 0.0
    %161 = vmatprep.subr.mxu0 0.0
    %162 = vmatpush1.msra.mxu0 0.0
    %163 = vmatprep.subr.mxu0 0.0
    %164 = vmatpush1.msra.mxu0 0.0
    %165 = vmatprep.subr.mxu0 0.0
    %166 = vmatpush1.msra.mxu0 %v81
    %167 = vmatprep.subr.mxu0 0.0
    %168 = vmatpush1.msra.mxu0 %v80
    %169 = vmatprep.subr.mxu0 0.0
    %170 = vmatpush1.msra.mxu0 %v79
    %171 = vmatprep.subr.mxu0 0.0
    %172 = vmatpush1.msra.mxu0 %v78
    %173 = vmatprep.subr.mxu0 0.0
    %174 = vmatpush2.msra.mxu0 0.0
    %175 = vmatprep.subr.mxu0 0.0
    %176 = vmatpush2.msra.mxu0 0.0
    %177 = vmatprep.subr.mxu0 0.0
    %178 = vmatpush2.msra.mxu0 0.0
    %179 = vmatprep.subr.mxu0 0.0
    %180 = vmatpush2.msra.mxu0 0.0
    %181 = vmatprep.subr.mxu0 0.0
    %182 = vmatpush2.msra.mxu0 0.0
    %183 = vmatprep.subr.mxu0 0.0
    %184 = vmatpush2.msra.mxu0 0.0
    %185 = vmatprep.subr.mxu0 0.0
    %186 = vmatpush2.msra.mxu0 0.0
    %187 = vmatprep.subr.mxu0 0.0
    %188 = vmatpush2.msra.mxu0 0.0
    %189 = vmatprep.subr.mxu0 0.0
    %190 = vmatpush2.msra.mxu0 0.0
    %191 = vmatprep.subr.mxu0 0.0
    %192 = vmatpush2.msra.mxu0 0.0
    %193 = vmatprep.subr.mxu0 0.0
    %194 = vmatpush2.msra.mxu0 0.0
    %195 = vmatprep.subr.mxu0 0.0
    %196 = vmatpush2.msra.mxu0 0.0
    %197 = vmatprep.subr.mxu0 0.0
    %198 = vmatpush2.msra.mxu0 0.0
    %199 = vmatprep.subr.mxu0 0.0
    %200 = vmatpush2.msra.mxu0 0.0
    %201 = vmatprep.subr.mxu0 0.0
    %202 = vmatpush2.msra.mxu0 0.0
    %203 = vmatprep.subr.mxu0 0.0
    %204 = vmatpush2.msra.mxu0 0.0
    %205 = vmatprep.mubr.f32.mxu0 0.0
    %206 = vmatmul.mubr.f32.gmra.mxu0 %v139
    %v207 = vpop.f32.mrf.mxu0
    %v208 = vadd.f32 0.0, %v207
    %v209 = vpop.f32.mrf.mxu0
    %210 = vdwg.mxu0
    %v211 = vmax.f32 %v208, 0.0
    %v212 = vld [vmem:[%s2] sm:$0x3]
    %vm213 = vcmask 15360
    %v215 = vsel %vm213, %v211, 0
    %vm217 = vcmask 1041408
    %v219 = vsel %vm217, %v212, 0
    %221 = vmatprep.subr.mxu0 0.0
    %222 = vmatpush1.msra.mxu0 0.0
    %223 = vmatprep.subr.mxu0 0.0
    %224 = vmatpush1.msra.mxu0 0.0
    %225 = vmatprep.subr.mxu0 0.0
    %226 = vmatpush1.msra.mxu0 0.0
    %227 = vmatprep.subr.mxu0 0.0
    %228 = vmatpush1.msra.mxu0 0.0
    %229 = vmatprep.subr.mxu0 0.0
    %230 = vmatpush1.msra.mxu0 0.0
    %231 = vmatprep.subr.mxu0 0.0
    %232 = vmatpush1.msra.mxu0 0.0
    %233 = vmatprep.subr.mxu0 0.0
    %234 = vmatpush1.msra.mxu0 0.0
    %235 = vmatprep.subr.mxu0 0.0
    %236 = vmatpush1.msra.mxu0 0.0
    %237 = vmatprep.subr.mxu0 0.0
    %238 = vmatpush1.msra.mxu0 0.0
    %239 = vmatprep.subr.mxu0 0.0
    %240 = vmatpush1.msra.mxu0 0.0
    %241 = vmatprep.subr.mxu0 0.0
    %242 = vmatpush1.msra.mxu0 0.0
    %243 = vmatprep.subr.mxu0 0.0
    %244 = vmatpush1.msra.mxu0 0.0
    %245 = vmatprep.subr.mxu0 0.0
    %246 = vmatpush1.msra.mxu0 0.0
    %247 = vmatprep.subr.mxu0 0.0
    %248 = vmatpush1.msra.mxu0 0.0
    %249 = vmatprep.subr.mxu0 0.0
    %250 = vmatpush1.msra.mxu0 0.0
    %251 = vmatprep.subr.mxu0 0.0
    %252 = vmatpush1.msra.mxu0 %v219
    %253 = vmatprep.subr.mxu0 0.0
    %254 = vmatpush2.msra.mxu0 0.0
    %255 = vmatprep.subr.mxu0 0.0
    %256 = vmatpush2.msra.mxu0 0.0
    %257 = vmatprep.subr.mxu0 0.0
    %258 = vmatpush2.msra.mxu0 0.0
    %259 = vmatprep.subr.mxu0 0.0
    %260 = vmatpush2.msra.mxu0 0.0
    %261 = vmatprep.subr.mxu0 0.0
    %262 = vmatpush2.msra.mxu0 0.0
    %263 = vmatprep.subr.mxu0 0.0
    %264 = vmatpush2.msra.mxu0 0.0
    %265 = vmatprep.subr.mxu0 0.0
    %266 = vmatpush2.msra.mxu0 0.0
    %267 = vmatprep.subr.mxu0 0.0
    %268 = vmatpush2.msra.mxu0 0.0
    %269 = vmatprep.subr.mxu0 0.0
    %270 = vmatpush2.msra.mxu0 0.0
    %271 = vmatprep.subr.mxu0 0.0
    %272 = vmatpush2.msra.mxu0 0.0
    %273 = vmatprep.subr.mxu0 0.0
    %274 = vmatpush2.msra.mxu0 0.0
    %275 = vmatprep.subr.mxu0 0.0
    %276 = vmatpush2.msra.mxu0 0.0
    %277 = vmatprep.subr.mxu0 0.0
    %278 = vmatpush2.msra.mxu0 0.0
    %279 = vmatprep.subr.mxu0 0.0
    %280 = vmatpush2.msra.mxu0 0.0
    %281 = vmatprep.subr.mxu0 0.0
    %282 = vmatpush2.msra.mxu0 0.0
    %283 = vmatprep.subr.mxu0 0.0
    %284 = vmatpush2.msra.mxu0 0.0
    %285 = vmatprep.mubr.f32.mxu0 0.0
    %286 = vmatmul.mubr.f32.gmra.mxu0 %v215
    %v287 = vpop.f32.mrf.mxu0
    %v288 = vadd.f32 0.0, %v287
    %v289 = vpop.f32.mrf.mxu0
    %290 = vdwg.mxu0
    %v291 = vxor.u32 %v288, 2147483648
    %v292 = vmul.f32 %v291, 1.442695
    %v293 = vpow.pop %v292
    %v294 = vadd.f32 %v293, 1.0
    %v295 = vrcp.pop %v294
    %v296 = vmul.f32 1.0, %v295
    %v297 = vlaneseq
    %v298 = vshrl.u32 %v297, 7
    %v299 = vsub.s32 0, %v298
    %v300 = vrot.slane %v296, %v299
    %302 = vbcast.lane.b32.xlu0 %v300, 256
    %v303 = vpop.permute.xlu0 %302
    %s305 = sor.u32 256, 8
    %306 = vbcast.lane.b32.xlu0 %v300, %s305
    %v307 = vpop.permute.xlu0 %306
    %s309 = sor.u32 256, 16
    %310 = vbcast.lane.b32.xlu0 %v300, %s309
    %v311 = vpop.permute.xlu0 %310
    %s313 = sor.u32 256, 24
    %314 = vbcast.lane.b32.xlu0 %v300, %s313
    %v315 = vpop.permute.xlu0 %314
    %v316 = vlaneseq
    %v317 = vshrl.u32 %v316, 7
    %v318 = vsub.s32 1, %v317
    %v319 = vrot.slane %v296, %v318
    %321 = vbcast.lane.b32.xlu0 %v319, 256
    %v322 = vpop.permute.xlu0 %321
    %s324 = sor.u32 256, 8
    %325 = vbcast.lane.b32.xlu0 %v319, %s324
    %v326 = vpop.permute.xlu0 %325
    %s328 = sor.u32 256, 16
    %329 = vbcast.lane.b32.xlu0 %v319, %s328
    %v330 = vpop.permute.xlu0 %329
    %s332 = sor.u32 256, 24
    %333 = vbcast.lane.b32.xlu0 %v319, %s332
    %v334 = vpop.permute.xlu0 %333
    %v335 = vmul.f32 %v29, %v303
    %v336 = vmul.f32 %v30, %v303
    %v337 = vmul.f32 %v31, %v307
    %v338 = vmul.f32 %v32, %v307
    %v339 = vmul.f32 %v33, %v311
    %v340 = vmul.f32 %v34, %v311
    %v341 = vmul.f32 %v35, %v315
    %v342 = vmul.f32 %v36, %v315
    %v343 = vmul.f32 %v37, %v322
    %v344 = vmul.f32 %v38, %v322
    %v345 = vmul.f32 %v39, %v326
    %v346 = vmul.f32 %v40, %v326
    %v347 = vmul.f32 %v41, %v330
    %v348 = vmul.f32 %v42, %v330
    %v349 = vmul.f32 %v43, %v334
    %v350 = vmul.f32 %v44, %v334
    %351 = vst [vmem:[#allocation5] sm:$0xff] %v335
    %352 = vst [vmem:[#allocation5 + $0x8] sm:$0xff] %v336
    %353 = vst [vmem:[#allocation5 + $0x10] sm:$0xff] %v337
    %354 = vst [vmem:[#allocation5 + $0x18] sm:$0xff] %v338
    %355 = vst [vmem:[#allocation5 + $0x20] sm:$0xff] %v339
    %356 = vst [vmem:[#allocation5 + $0x28] sm:$0xff] %v340
    %357 = vst [vmem:[#allocation5 + $0x30] sm:$0xff] %v341
    %358 = vst [vmem:[#allocation5 + $0x38] sm:$0xff] %v342
    %359 = vst [vmem:[#allocation5 + $0x40] sm:$0xff] %v343
    %360 = vst [vmem:[#allocation5 + $0x48] sm:$0xff] %v344
    %361 = vst [vmem:[#allocation5 + $0x50] sm:$0xff] %v345
    %362 = vst [vmem:[#allocation5 + $0x58] sm:$0xff] %v346
    %363 = vst [vmem:[#allocation5 + $0x60] sm:$0xff] %v347
    %364 = vst [vmem:[#allocation5 + $0x68] sm:$0xff] %v348
    %365 = vst [vmem:[#allocation5 + $0x70] sm:$0xff] %v349
    %366 = vst [vmem:[#allocation5 + $0x78] sm:$0xff] %v350
    // Predicated region
    $region18: #{tpu_custom_call.1} parent=1 // pred_check
      _
    $region19: #{tpu_custom_call.1} parent=1 // pred_check_branch
      %368 = sbr.rel (0) target = $region21
    $region20: #{tpu_custom_call.1} parent=1 // pred_region
      %s370 = ssub.s32 2048, 2048
      %371 = vsyncadd [#allocation4], %s370
      %s372 = sshll.u32 [#allocation5], 4
      %s373 = int_to_ptr.vmem [resolvable:$true] %s372
      %378 = dma.vmem_to_hbm [thread:$0]  %s373, 2048, %s3, [#allocation4], 256, 256, 16
    $region21: #{tpu_custom_call.1} parent=1 // pred_fallthru
      _
    // Predicated region
    $region22: #{tpu_custom_call.1} parent=1 // pred_check
      _
    $region23: #{tpu_custom_call.1} parent=1 // pred_check_branch
      %380 = sbr.rel (0) target = $region25
    $region24: #{tpu_custom_call.1} parent=1 // pred_region
      %381 = dma.done [#allocation4], 2048
    $region25: #{tpu_custom_call.1} parent=1 // pred_fallthru
      _
    %382 = vsyncpa [#allocation3], 1
    %383 = vsyncpa [#allocation4], 1

</llo_original>
